<compile_context>
chip_gen: v7x
topology: tpu7x:2x2x1
jax: 0.10.0
libtpu: 0.0.40
codegen_flags: <defaults>
</compile_context>

<pallas_src>
import jax
import jax.numpy as jnp
import numpy as np
from jax import lax
from jax.experimental import pallas as pl
from jax.experimental.pallas import tpu as pltpu


def _round_up(x, m):
    return ((x + m - 1) // m) * m


def _cdiv(a, b):
    return (a + b - 1) // b


# Per-call VMEM budget for the double-buffered operand/output tiles.
# Conservative for v7x (64 MiB physical) and v5e (16 MiB default scoped,
# which we raise via vmem_limit_bytes below).
_TILE_VMEM_BUDGET = 20 * 1024 * 1024


def _dense_kernel(x_ref, w_ref, b_ref, o_ref):
    # x_ref: (tm, K)   w_ref: (tn, K)   b_ref: (1, tn)   o_ref: (tm, tn)
    # Full-K contraction on dim 1 of BOTH operands -> y = x @ W^T on the MXU,
    # f32 accumulation, bias fused, direct store (no scratch, no K loop).
    acc = lax.dot_general(
        x_ref[...], w_ref[...],
        dimension_numbers=(((1,), (1,)), ((), ())),
        preferred_element_type=jnp.float32)
    o_ref[...] = (acc + b_ref[...].astype(jnp.float32)).astype(o_ref.dtype)


def _choose_col_tile(c_out, c_in, itemsize):
    """Output-lane tile tn and whether c_out must be padded to a 128-multiple."""
    if c_out % 128 == 0:
        tn = 128
        for cand in (512, 384, 256):  # bigger exact divisor -> fewer x re-reads
            if c_out % cand == 0 and 2 * cand * c_in * itemsize <= _TILE_VMEM_BUDGET // 2:
                tn = cand
                break
        return tn, False
    # c_out not a 128-multiple: keep the whole c_out as one lane tile (zero
    # padding; the sub-128 tail is a masked store) unless the resident weight
    # tile would be too large, in which case pad to a lane-dense multiple.
    if 2 * c_out * c_in * itemsize <= _TILE_VMEM_BUDGET // 2:
        return c_out, False
    return 128, True


def _choose_row_tile(n, sub, grid_n, tn, tk, itemsize, out_itemsize):
    """Row tile tm (multiple of the sublane count, or == n) under the VMEM budget."""
    cap = 512
    nblk = _cdiv(_round_up(n, sub), cap)
    # Give the second TensorCore (v7x) work when the grid would otherwise be
    # a single block and the problem is big enough to amortize the extra step.
    if nblk * grid_n == 1 and n >= 256:
        nblk = 2
    tm = n if nblk == 1 else _round_up(_cdiv(n, nblk), sub)

    def footprint(tm_):
        return 2 * ((tm_ * tk + tn * tk + tn) * itemsize + tm_ * tn * out_itemsize)

    while footprint(tm) > _TILE_VMEM_BUDGET and tm > sub:
        tm = max(sub, _round_up(tm // 2, sub))
    return tm, footprint(tm)


@jax.jit
def dense_layer(node_feats, weight, bias):
    """y = node_feats @ weight.T + bias   (matches torch.nn.Linear forward).

    node_feats: [..., c_in]
    weight:     [c_out, c_in]   (PyTorch convention; never transposed in HBM)
    bias:       [c_out]
    """
    *lead, c_in = node_feats.shape
    c_out = weight.shape[0]
    x = node_feats.reshape(-1, c_in)
    n = x.shape[0]

    itemsize = jnp.dtype(x.dtype).itemsize
    out_itemsize = itemsize
    sub = 16 if x.dtype == jnp.bfloat16 else 8

    tk = c_in  # full-K contraction: no K grid axis, no K padding
    tn, pad_cout = _choose_col_tile(c_out, c_in, itemsize)
    m_p = _round_up(c_out, 128) if pad_cout else c_out
    grid_n = _cdiv(m_p, tn)
    tm, tile_bytes = _choose_row_tile(n, sub, grid_n, tn, tk, itemsize, out_itemsize)
    grid_m = _cdiv(n, tm)

    w = weight
    b = bias
    if pad_cout:  # rare: very large, non-128-multiple c_out
        w = jnp.pad(w, ((0, m_p - c_out), (0, 0)))
        b = jnp.pad(b, (0, m_p - c_out))
    b2 = b.reshape(1, m_p)

    # Honest scheduling hint: x is resident across the (inner) column axis, the
    # weight is re-streamed once per row block.
    cost = pl.CostEstimate(
        flops=2 * (grid_m * tm) * tk * (grid_n * tn),
        transcendentals=0,
        bytes_accessed=(n * c_in                      # activations (read once)
                        + grid_m * m_p * c_in         # weight, re-streamed per row block
                        + grid_m * m_p                # bias
                        + n * m_p) * itemsize)        # output

    vmem_limit = int(max(32 * 1024 * 1024,
                         min(48 * 1024 * 1024, 2 * tile_bytes)))

    out = pl.pallas_call(
        _dense_kernel,
        out_shape=jax.ShapeDtypeStruct((n, m_p), node_feats.dtype),
        grid=(grid_m, grid_n),
        in_specs=[
            pl.BlockSpec((tm, tk), lambda i, j: (i, 0)),   # activations
            pl.BlockSpec((tn, tk), lambda i, j: (j, 0)),   # W[c_out, c_in] tile
            pl.BlockSpec((1, tn), lambda i, j: (0, j)),    # bias tile
        ],
        out_specs=pl.BlockSpec((tm, tn), lambda i, j: (i, j)),
        compiler_params=pltpu.CompilerParams(
            dimension_semantics=("parallel", "parallel"),
            vmem_limit_bytes=vmem_limit),
        cost_estimate=cost,
    )(x, w, b2)

    if pad_cout:
        out = out[:, :c_out]
    return out.reshape(*lead, c_out)


def init_dense_params(key, c_in, c_out, zero_init=False, dtype=jnp.float32):
    """Re-implementation of DenseLayer.__init__ (Xavier-uniform W, zero bias)."""
    if zero_init:
        weight = jnp.zeros((c_out, c_in), dtype=dtype)
    else:
        bound = float(np.sqrt(6.0 / (c_in + c_out)))
        weight = jax.random.uniform(
            key, (c_out, c_in), dtype=dtype, minval=-bound, maxval=bound)
    bias = jnp.zeros((c_out,), dtype=dtype)
    return weight, bias


if __name__ == "__main__":
    key = jax.random.PRNGKey(0)
    k1, k2, k3, k4, k5, k6, k7, k8 = jax.random.split(key, 8)

    # --- check 1: toy GAT-sized node features with Xavier-init params -------
    # Single (8, 32) block, c_out not a 128-multiple -> full-dim lane tile.
    N, C_IN, C_OUT = 8, 32, 32
    x1 = jax.random.normal(k1, (N, C_IN), dtype=jnp.float32)
    w1, b1 = init_dense_params(k2, C_IN, C_OUT, zero_init=False)
    y1 = jax.block_until_ready(dense_layer(x1, w1, b1))
    y1_ref = x1 @ w1.T + b1
    np.testing.assert_allclose(np.asarray(y1), np.asarray(y1_ref), rtol=1e-4, atol=1e-4)

    # --- check 2: leading batch dim, multi row-block grid, 256-wide c_out ---
    # n=600 rows -> two 304-row blocks (last one partial / masked), tn=256,
    # zero padding anywhere.  Integer-grid data makes the result exact.
    B, N2, C_IN2, C_OUT2 = 2, 300, 96, 256
    x2 = jax.random.randint(k3, (B, N2, C_IN2), -4, 5).astype(jnp.float32)
    w2 = jax.random.randint(k4, (C_OUT2, C_IN2), -8, 9).astype(jnp.float32) / 8.0
    b2 = jax.random.randint(k5, (C_OUT2,), -8, 9).astype(jnp.float32) / 8.0
    y2 = jax.block_until_ready(dense_layer(x2, w2, b2))
    y2_ref = jnp.einsum("bnk,ck->bnc", x2, w2) + b2
    np.testing.assert_allclose(np.asarray(y2), np.asarray(y2_ref), rtol=0.0, atol=1e-5)

    # --- check 3: fully unaligned small dims (no padding, full-dim tiles) ---
    B3, N3, C_IN3, C_OUT3 = 3, 5, 48, 80
    x3 = jax.random.randint(k6, (B3, N3, C_IN3), -4, 5).astype(jnp.float32)
    w3 = jax.random.randint(k7, (C_OUT3, C_IN3), -8, 9).astype(jnp.float32) / 8.0
    b3 = jax.random.randint(k8, (C_OUT3,), -8, 9).astype(jnp.float32) / 8.0
    y3 = jax.block_until_ready(dense_layer(x3, w3, b3))
    y3_ref = jnp.einsum("bnk,ck->bnc", x3, w3) + b3
    np.testing.assert_allclose(np.asarray(y3), np.asarray(y3_ref), rtol=0.0, atol=1e-5)

    print("KERNEL_OK")
</pallas_src>

<mosaic_0001>
module attributes {stable_mosaic.version = 11 : i64} {
  func.func @_dense_kernel(%arg0: i32, %arg1: i32, %arg2: memref<8x32xf32, #tpu.memory_space<vmem>>, %arg3: memref<32x32xf32, #tpu.memory_space<vmem>>, %arg4: memref<1x32xf32, #tpu.memory_space<vmem>>, %arg5: memref<8x32xf32, #tpu.memory_space<vmem>>) attributes {dimension_semantics = [#tpu.dimension_semantics<parallel>, #tpu.dimension_semantics<parallel>], iteration_bounds = array<i64: 1, 1>, scalar_prefetch = 0 : i64, scratch_operands = 0 : i64, tpu.core_type = #tpu.core_type<tc>, window_params = [{transform_indices = @transform_0, window_bounds = array<i64: 8, 32>}, {transform_indices = @transform_1, window_bounds = array<i64: 32, 32>}, {transform_indices = @transform_2, window_bounds = array<i64: 1, 32>}, {transform_indices = @transform_3, window_bounds = array<i64: 8, 32>}]} {
    %c0 = arith.constant 0 : index
    %c0_0 = arith.constant 0 : index
    %0 = vector.load %arg2[%c0, %c0_0] : memref<8x32xf32, #tpu.memory_space<vmem>>, vector<8x32xf32>
    %c0_1 = arith.constant 0 : index
    %c0_2 = arith.constant 0 : index
    %1 = vector.load %arg3[%c0_1, %c0_2] : memref<32x32xf32, #tpu.memory_space<vmem>>, vector<32x32xf32>
    %cst = arith.constant dense<0.000000e+00> : vector<8x32xf32>
    %2 = tpu.matmul %0, %1, %cst {dimension_numbers = #tpu.dot_dimension_numbers<[1], [1], [0], [0], [0, 0, 1, 0], [], []>} : vector<8x32xf32>, vector<32x32xf32>, vector<8x32xf32> -> vector<8x32xf32>
    %c0_3 = arith.constant 0 : index
    %c0_4 = arith.constant 0 : index
    %3 = vector.load %arg4[%c0_3, %c0_4] : memref<1x32xf32, #tpu.memory_space<vmem>>, vector<1x32xf32>
    %4 = vector.broadcast %3 : vector<1x32xf32> to vector<8x32xf32>
    %5 = arith.addf %2, %4 : vector<8x32xf32>
    %c0_5 = arith.constant 0 : index
    %c0_6 = arith.constant 0 : index
    %6 = vector.load %arg5[%c0_5, %c0_6] : memref<8x32xf32, #tpu.memory_space<vmem>>, vector<8x32xf32>
    tpu.vector_store %arg5[%c0_5, %c0_6], %5 {strides = array<i32>} : memref<8x32xf32, #tpu.memory_space<vmem>>, vector<8x32xf32>,
    return
  }
  func.func @transform_0(%arg0: i32, %arg1: i32) -> (i32, i32) {
    %c0_i32 = arith.constant 0 : i32
    %c0_i32_0 = arith.constant 0 : i32
    return %arg0, %c0_i32 : i32, i32
  }
  func.func @transform_1(%arg0: i32, %arg1: i32) -> (i32, i32) {
    %c0_i32 = arith.constant 0 : i32
    %c0_i32_0 = arith.constant 0 : i32
    return %arg1, %c0_i32 : i32, i32
  }
  func.func @transform_2(%arg0: i32, %arg1: i32) -> (i32, i32) {
    %c0_i32 = arith.constant 0 : i32
    %c0_i32_0 = arith.constant 0 : i32
    return %c0_i32, %arg1 : i32, i32
  }
  func.func @transform_3(%arg0: i32, %arg1: i32) -> (i32, i32) {
    %c0_i32 = arith.constant 0 : i32
    return %arg0, %arg1 : i32, i32
  }
}

</mosaic_0001>

<llo_original>
// kernel: dense_layer.1
$region0: #{dense_layer.1}
  #allocation0 [shape = 'u32[]', space=smem, size = 0x4, offset = 0x4, fixed_abs, tag = 'smem constant byte address 0x4 - core index']
  #allocation1 [shape = 'u32[144,128]{1,0:T(1,128)}', space=vmem, size = 0x12000, scoped, tag = 'internal scratch']
  %s0 = inlined_call_operand.hbm [shape: f32[8,32], index: 0, kind: input, shape index: {}]
  %s1 = inlined_call_operand.hbm [shape: f32[32,32], index: 1, kind: input, shape index: {}]
  %s2 = inlined_call_operand.vmem [shape: f32[1,32], index: 2, kind: input, shape index: {}]
  %s3 = inlined_call_operand.hbm [shape: f32[8,32], index: 3, kind: output, shape index: {}]
  %s4 = sld [smem:[#allocation0]]
  $region30: #{dense_layer.1} parent=0
    _
  %s6 = ssub.s32 1, %s4
  %s7 = scalar_select 0, %s6, %s4
  $region1: #{dense_layer.1} parent=0
    #allocation2 [shape = 'u8[4096]{0}', space=vmem, size = 0x1000, scoped, tag = 'input window, operand 0, single buffered']
    #allocation3 [shape = 's32[1]{0}', space=sflag, size = 0x4, scoped, tag = 'scoped memory for dense_layer.1']
    #allocation4 [shape = 's32[1]{0}', space=sflag, size = 0x4, scoped, tag = 'scoped memory for dense_layer.1']
    #allocation5 [shape = 'u8[16384]{0}', space=vmem, size = 0x4000, scoped, tag = 'input window, operand 1, single buffered']
    #allocation6 [shape = 's32[1]{0}', space=sflag, size = 0x4, scoped, tag = 'scoped memory for dense_layer.1']
    #allocation7 [shape = 'u8[4096]{0}', space=vmem, size = 0x1000, scoped, tag = 'output window, operand 0, single buffered']
    %8 = vsyncpa [#allocation3], 0
    %9 = vsyncpa [#allocation6], 0
    %10 = vsyncpa [#allocation4], 0
    // Predicated region
    $region2: #{dense_layer.1} parent=1 // pred_check
      _
    $region3: #{dense_layer.1} parent=1 // pred_check_branch
      %12 = sbr.rel (0) target = $region5
    $region4: #{dense_layer.1} parent=1 // pred_region
      %s14 = ssub.s32 128, 128
      %15 = vsyncadd [#allocation3], %s14
      %s17 = sshll.u32 [#allocation2], 4
      %s18 = int_to_ptr.vmem [resolvable:$true] %s17
      %20 = dma.hbm_to_vmem [thread:$0]  %s0, 128, %s18, [#allocation3]
    $region5: #{dense_layer.1} parent=1 // pred_fallthru
      _
    // Predicated region
    $region6: #{dense_layer.1} parent=1 // pred_check
      _
    $region7: #{dense_layer.1} parent=1 // pred_check_branch
      %22 = sbr.rel (0) target = $region9
    $region8: #{dense_layer.1} parent=1 // pred_region
      %s24 = ssub.s32 512, 512
      %25 = vsyncadd [#allocation6], %s24
      %s26 = sshll.u32 [#allocation5], 4
      %s27 = int_to_ptr.vmem [resolvable:$true] %s26
      %32 = dma.hbm_to_vmem [thread:$0]  %s1, 512, %s27, [#allocation6], 128, 128, 8
    $region9: #{dense_layer.1} parent=1 // pred_fallthru
      _
    // Predicated region
    $region10: #{dense_layer.1} parent=1 // pred_check
      _
    $region11: #{dense_layer.1} parent=1 // pred_check_branch
      %34 = sbr.rel (0) target = $region13
    $region12: #{dense_layer.1} parent=1 // pred_region
      _
    $region13: #{dense_layer.1} parent=1 // pred_fallthru
      _
    // Predicated region
    $region14: #{dense_layer.1} parent=1 // pred_check
      _
    $region15: #{dense_layer.1} parent=1 // pred_check_branch
      %36 = sbr.rel (0) target = $region17
    $region16: #{dense_layer.1} parent=1 // pred_region
      %37 = dma.done [#allocation3], 128
    $region17: #{dense_layer.1} parent=1 // pred_fallthru
      _
    // Predicated region
    $region18: #{dense_layer.1} parent=1 // pred_check
      _
    $region19: #{dense_layer.1} parent=1 // pred_check_branch
      %39 = sbr.rel (0) target = $region21
    $region20: #{dense_layer.1} parent=1 // pred_region
      %40 = dma.done [#allocation6], 512
    $region21: #{dense_layer.1} parent=1 // pred_fallthru
      _
    %v41 = vld [vmem:[#allocation2] sm:$0xff]
    %v42 = vld [vmem:[#allocation5] sm:$0xff]
    %v43 = vld [vmem:[#allocation5 + $0x8] sm:$0xff]
    %v44 = vld [vmem:[#allocation5 + $0x10] sm:$0xff]
    %v45 = vld [vmem:[#allocation5 + $0x18] sm:$0xff]
    %v46 = vld [vmem:[%s2] sm:$0x1]
    %v48 = vlaneseq
    %v49 = vshrl.u32 %v48, 7
    %v50 = vsub.s32 0, %v49
    %v51 = vrot.slane %v46, %v50
    %vm53 = vcmask 261120
    %v55 = vsel %vm53, %v41, 0
    %v58 = vsel %vm53, %v42, 0
    %v61 = vsel %vm53, %v43, 0
    %v64 = vsel %vm53, %v44, 0
    %v67 = vsel %vm53, %v45, 0
    %69 = vmatprep.subr.mxu0 0.0
    %70 = vmatpush1.xpose.msra.mxu0 %v58
    %71 = vmatprep.subr.mxu0 0.0
    %72 = vmatpush1.xpose.msra.mxu0 %v61
    %73 = vmatprep.subr.mxu0 0.0
    %74 = vmatpush1.xpose.msra.mxu0 %v64
    %75 = vmatprep.subr.mxu0 0.0
    %76 = vmatpush1.xpose.msra.mxu0 %v67
    %77 = vmatprep.subr.mxu0 0.0
    %78 = vmatpush1.xpose.msra.mxu0 0.0
    %79 = vmatprep.subr.mxu0 0.0
    %80 = vmatpush1.xpose.msra.mxu0 0.0
    %81 = vmatprep.subr.mxu0 0.0
    %82 = vmatpush1.xpose.msra.mxu0 0.0
    %83 = vmatprep.subr.mxu0 0.0
    %84 = vmatpush1.xpose.msra.mxu0 0.0
    %85 = vmatprep.subr.mxu0 0.0
    %86 = vmatpush1.xpose.msra.mxu0 0.0
    %87 = vmatprep.subr.mxu0 0.0
    %88 = vmatpush1.xpose.msra.mxu0 0.0
    %89 = vmatprep.subr.mxu0 0.0
    %90 = vmatpush1.xpose.msra.mxu0 0.0
    %91 = vmatprep.subr.mxu0 0.0
    %92 = vmatpush1.xpose.msra.mxu0 0.0
    %93 = vmatprep.subr.mxu0 0.0
    %94 = vmatpush1.xpose.msra.mxu0 0.0
    %95 = vmatprep.subr.mxu0 0.0
    %96 = vmatpush1.xpose.msra.mxu0 0.0
    %97 = vmatprep.subr.mxu0 0.0
    %98 = vmatpush1.xpose.msra.mxu0 0.0
    %99 = vmatprep.subr.mxu0 0.0
    %100 = vmatpush1.xpose.msra.mxu0 0.0
    %101 = vmatprep.subr.mxu0 0.0
    %102 = vmatpush1.xpose.msra.mxu0 0.0
    %103 = vmatprep.subr.mxu0 0.0
    %104 = vmatpush1.xpose.msra.mxu0 0.0
    %105 = vmatprep.subr.mxu0 0.0
    %106 = vmatpush1.xpose.msra.mxu0 0.0
    %107 = vmatprep.subr.mxu0 0.0
    %108 = vmatpush1.xpose.msra.mxu0 0.0
    %109 = vmatprep.subr.mxu0 0.0
    %110 = vmatpush1.xpose.msra.mxu0 0.0
    %111 = vmatprep.subr.mxu0 0.0
    %112 = vmatpush1.xpose.msra.mxu0 0.0
    %113 = vmatprep.subr.mxu0 0.0
    %114 = vmatpush1.xpose.msra.mxu0 0.0
    %115 = vmatprep.subr.mxu0 0.0
    %116 = vmatpush1.xpose.msra.mxu0 0.0
    %117 = vmatprep.subr.mxu0 0.0
    %118 = vmatpush1.xpose.msra.mxu0 0.0
    %119 = vmatprep.subr.mxu0 0.0
    %120 = vmatpush1.xpose.msra.mxu0 0.0
    %121 = vmatprep.subr.mxu0 0.0
    %122 = vmatpush1.xpose.msra.mxu0 0.0
    %123 = vmatprep.subr.mxu0 0.0
    %124 = vmatpush1.xpose.msra.mxu0 0.0
    %125 = vmatprep.subr.mxu0 0.0
    %126 = vmatpush1.xpose.msra.mxu0 0.0
    %127 = vmatprep.subr.mxu0 0.0
    %128 = vmatpush1.xpose.msra.mxu0 0.0
    %129 = vmatprep.subr.mxu0 0.0
    %130 = vmatpush1.xpose.msra.mxu0 0.0
    %131 = vmatprep.subr.mxu0 0.0
    %132 = vmatpush1.xpose.msra.mxu0 0.0
    %133 = vmatprep.mubr.f32.mxu0 0.0
    %134 = vmatmul.mubr.f32.gmra.mrb[0].mxu0 %v55
    %v135 = vpop.f32.mrb[0].mxu0
    %v136 = vadd.f32 %v51, %v135
    %v137 = vpop.f32.mrb[0].mxu0
    %138 = vdwg.mxu0
    %139 = vst.msk [vmem:[#allocation7] sm:$0xff] %vm53, %v136
    // Predicated region
    $region22: #{dense_layer.1} parent=1 // pred_check
      _
    $region23: #{dense_layer.1} parent=1 // pred_check_branch
      %141 = sbr.rel (0) target = $region25
    $region24: #{dense_layer.1} parent=1 // pred_region
      %s143 = ssub.s32 128, 128
      %144 = vsyncadd [#allocation4], %s143
      %s146 = sshll.u32 [#allocation7], 4
      %s147 = int_to_ptr.vmem [resolvable:$true] %s146
      %149 = dma.vmem_to_hbm [thread:$0]  %s147, 128, %s3, [#allocation4]
    $region25: #{dense_layer.1} parent=1 // pred_fallthru
      _
    // Predicated region
    $region26: #{dense_layer.1} parent=1 // pred_check
      _
    $region27: #{dense_layer.1} parent=1 // pred_check_branch
      %151 = sbr.rel (0) target = $region29
    $region28: #{dense_layer.1} parent=1 // pred_region
      %152 = dma.done [#allocation4], 128
    $region29: #{dense_layer.1} parent=1 // pred_fallthru
      _
    %153 = vsyncpa [#allocation3], 1
    %154 = vsyncpa [#allocation6], 1
    %155 = vsyncpa [#allocation4], 1

</llo_original>
